<compile_context>
chip_gen: v7x
topology: tpu7x:2x2x1
jax: 0.10.0
libtpu: 0.0.40
codegen_flags: <defaults>
</compile_context>

<pallas_src>
import jax
import jax.numpy as jnp
from jax.experimental import pallas as pl
from jax.experimental.pallas import tpu as pltpu

_LANES = 128  # TPU vreg lane width


def _identity_kernel(x_ref, o_ref):
    # The entire forward pass of Decoder: y = x
    o_ref[...] = x_ref[...]


def decoder_forward(x):
    """Pallas implementation of Decoder.forward (identity pass-through)."""
    orig_shape = x.shape
    total = x.size

    # Lane-dense 2-D view: last dim = 128 lanes when possible so the copy uses
    # full-width (unmasked) vector loads/stores.
    if total % _LANES == 0:
        rows, cols = total // _LANES, _LANES
    else:
        cols = orig_shape[-1]
        rows = total // cols
    x2d = x.reshape(rows, cols)

    out = pl.pallas_call(
        _identity_kernel,
        out_shape=jax.ShapeDtypeStruct((rows, cols), x.dtype),
        # Gridless, full-array blocks resident in VMEM: minimum-overhead form.
        in_specs=[pl.BlockSpec(memory_space=pltpu.MemorySpace.VMEM)],
        out_specs=pl.BlockSpec(memory_space=pltpu.MemorySpace.VMEM),
        # Zero-copy pass-through: output aliases the input HBM buffer.
        input_output_aliases={0: 0},
    )(x2d)

    return out.reshape(orig_shape)


# NOTE: the Decoder __init__ declares hyperparameters (conv_blocks=4,
# conv_block_hiddens=(256,128,64,32), upsampling_ratio=(8,8,2,2),
# conv_layers=3, kernel sizes (3,7,11), dilations (1,3,5),
# mem_bank_size=1000, mem_bank_dim=192, mem_bank_attn_heads=2) but creates
# NO parameters/layers, and forward() ignores all of them.
# TODO(synk): no conv/upsample/memory-bank compute exists in the reference
# forward pass, so there is nothing further to lower into Pallas. If real
# compute is ever added, retile with a grid (lane-dense ~512-row blocks,
# vmem_limit_bytes set explicitly, leading axis marked "parallel") to stay
# within v7x's 64 MiB VMEM and use both TensorCores.


if __name__ == "__main__":
    key = jax.random.PRNGKey(0)
    # Small NCHW-style decoder input.
    x = jax.random.normal(key, (2, 4, 16, 16), dtype=jnp.float32)

    y = decoder_forward(x)
    y = jax.block_until_ready(y)

    assert y.shape == x.shape and y.dtype == x.dtype
    assert bool(jnp.array_equal(y, x))
    print("KERNEL_OK")
</pallas_src>

<mosaic_0001>
module attributes {stable_mosaic.version = 11 : i64} {
  func.func @_identity_kernel(%arg0: memref<16x128xf32, #tpu.memory_space<vmem>>, %arg1: memref<16x128xf32, #tpu.memory_space<vmem>>) attributes {dimension_semantics = [], scalar_prefetch = 0 : i64, scratch_operands = 0 : i64, tpu.core_type = #tpu.core_type<tc>} {
    %c0 = arith.constant 0 : index
    %c0_0 = arith.constant 0 : index
    %0 = vector.load %arg0[%c0, %c0_0] : memref<16x128xf32, #tpu.memory_space<vmem>>, vector<16x128xf32>
    %c0_1 = arith.constant 0 : index
    %c0_2 = arith.constant 0 : index
    %1 = vector.load %arg1[%c0_1, %c0_2] : memref<16x128xf32, #tpu.memory_space<vmem>>, vector<16x128xf32>
    tpu.vector_store %arg1[%c0_1, %c0_2], %0 {strides = array<i32>} : memref<16x128xf32, #tpu.memory_space<vmem>>, vector<16x128xf32>,
    return
  }
}

</mosaic_0001>

<llo_original>
// kernel: tpu_custom_call.1
$region0: #{tpu_custom_call.1}
  #allocation0 [shape = 'u32[]', space=smem, size = 0x4, offset = 0x4, fixed_abs, tag = 'smem constant byte address 0x4 - core index']
  #allocation1 [shape = 'u32[144,128]{1,0:T(1,128)}', space=vmem, size = 0x12000, scoped, tag = 'internal scratch']
  %s0 = inlined_call_operand.hbm [shape: f32[16,128], index: 0, kind: input, shape index: {}, may-alias: {0,1}]
  %s1 = inlined_call_operand.hbm [shape: f32[16,128], index: 1, kind: output, shape index: {}, may-alias: {0,1}]
  %s2 = sld [smem:[#allocation0]]
  $region18: #{tpu_custom_call.1} parent=0
    _
  %s4 = ssub.s32 1, %s2
  %s5 = scalar_select 0, %s4, %s2
  $region1: #{tpu_custom_call.1} parent=0
    #allocation2 [shape = 'u8[8192]{0}', space=vmem, size = 0x2000, scoped, tag = 'input window, operand 0, single buffered']
    #allocation3 [shape = 's32[1]{0}', space=sflag, size = 0x4, scoped, tag = 'scoped memory for tpu_custom_call.1']
    #allocation4 [shape = 's32[1]{0}', space=sflag, size = 0x4, scoped, tag = 'scoped memory for tpu_custom_call.1']
    #allocation5 [shape = 'u8[8192]{0}', space=vmem, size = 0x2000, scoped, tag = 'output window, operand 0, single buffered']
    %6 = vsyncpa [#allocation3], 0
    %7 = vsyncpa [#allocation4], 0
    // Predicated region
    $region2: #{tpu_custom_call.1} parent=1 // pred_check
      _
    $region3: #{tpu_custom_call.1} parent=1 // pred_check_branch
      %9 = sbr.rel (0) target = $region5
    $region4: #{tpu_custom_call.1} parent=1 // pred_region
      %s11 = ssub.s32 256, 256
      %12 = vsyncadd [#allocation3], %s11
      %s13 = sshll.u32 [#allocation2], 4
      %s14 = int_to_ptr.vmem [resolvable:$true] %s13
      %19 = dma.hbm_to_vmem [thread:$0]  %s0, 256, %s14, [#allocation3], 128, 128, 8
    $region5: #{tpu_custom_call.1} parent=1 // pred_fallthru
      _
    // Predicated region
    $region6: #{tpu_custom_call.1} parent=1 // pred_check
      _
    $region7: #{tpu_custom_call.1} parent=1 // pred_check_branch
      %21 = sbr.rel (0) target = $region9
    $region8: #{tpu_custom_call.1} parent=1 // pred_region
      %22 = dma.done [#allocation3], 256
    $region9: #{tpu_custom_call.1} parent=1 // pred_fallthru
      _
    %v23 = vld [vmem:[#allocation2] sm:$0xff]
    %v24 = vld [vmem:[#allocation2 + $0x8] sm:$0xff]
    %25 = vst [vmem:[#allocation5] sm:$0xff] %v23
    %26 = vst [vmem:[#allocation5 + $0x8] sm:$0xff] %v24
    // Predicated region
    $region10: #{tpu_custom_call.1} parent=1 // pred_check
      _
    $region11: #{tpu_custom_call.1} parent=1 // pred_check_branch
      %28 = sbr.rel (0) target = $region13
    $region12: #{tpu_custom_call.1} parent=1 // pred_region
      %s30 = ssub.s32 256, 256
      %31 = vsyncadd [#allocation4], %s30
      %s32 = sshll.u32 [#allocation5], 4
      %s33 = int_to_ptr.vmem [resolvable:$true] %s32
      %38 = dma.vmem_to_hbm [thread:$0]  %s33, 256, %s1, [#allocation4], 128, 128, 8
    $region13: #{tpu_custom_call.1} parent=1 // pred_fallthru
      _
    // Predicated region
    $region14: #{tpu_custom_call.1} parent=1 // pred_check
      _
    $region15: #{tpu_custom_call.1} parent=1 // pred_check_branch
      %40 = sbr.rel (0) target = $region17
    $region16: #{tpu_custom_call.1} parent=1 // pred_region
      %41 = dma.done [#allocation4], 256
    $region17: #{tpu_custom_call.1} parent=1 // pred_fallthru
      _
    %42 = vsyncpa [#allocation3], 1
    %43 = vsyncpa [#allocation4], 1

</llo_original>
